<compile_context>
chip_gen: v7x
topology: tpu7x:2x2x1
jax: 0.10.0
libtpu: 0.0.40
codegen_flags: <defaults>
</compile_context>

<pallas_src>
import jax
import jax.numpy as jnp
from jax.experimental import pallas as pl
from jax.experimental.pallas import tpu as pltpu


def _sigmoid(z):
    # sigmoid(z) == 0.5 * tanh(0.5 * z) + 0.5  -> one EUP op instead of exp + divide.
    return 0.5 * jnp.tanh(0.5 * z) + 0.5


# ----------------------------------------------------------------------------
# Kernel
# ----------------------------------------------------------------------------
def _make_sae_kernel(P, tile_p, samples_per_block, cast_bf16=True):
    """Build the per-(sample-block, pixel-tile) kernel.

    x_ref:   (Nb, C, TP)  input pixels, pixel axis lane-dense
    w_ref:   (4, C, C)    [enc1, enc2, dec1, dec2] weights (rows = C_out)
    b_ref:   (4, C, 1)    matching biases (broadcast along the pixel axis)
    dec_ref: (Nb, C, TP)  decoded pixels
    rho_ref: (1, C, 1)    per-sample-block channel-sum of encoded activations
                          (resident accumulator across the pixel-tile axis)
    """
    needs_mask = (P % tile_p) != 0

    def kernel(x_ref, w_ref, b_ref, dec_ref, rho_ref):
        t = pl.program_id(1)

        @pl.when(t == 0)
        def _zero():
            rho_ref[...] = jnp.zeros_like(rho_ref)

        C = x_ref.shape[1]
        TP = x_ref.shape[2]

        w = w_ref[...]
        if cast_bf16:
            w = w.astype(jnp.bfloat16)

        if needs_mask:
            valid = P - t * tile_p
            col = jax.lax.broadcasted_iota(jnp.int32, (C, TP), 1)
            keep = col < valid

        rho_sum = jnp.zeros((1, C, 1), jnp.float32)
        # Static unroll over the samples in this block: the independent
        # 4-matmul chains interleave, keeping the MXU fed.
        for s in range(samples_per_block):
            x = x_ref[s]
            if cast_bf16:
                x = x.astype(jnp.bfloat16)

            # ---- encoder: 1x1 conv -> ReLU -> 1x1 conv -> Sigmoid ----
            h = jnp.maximum(
                jnp.dot(w[0], x, preferred_element_type=jnp.float32) + b_ref[0], 0.0)
            hc = h.astype(jnp.bfloat16) if cast_bf16 else h
            enc = _sigmoid(
                jnp.dot(w[1], hc, preferred_element_type=jnp.float32) + b_ref[1])

            # ---- decoder: 1x1 conv -> ReLU -> 1x1 conv -> Sigmoid ----
            ec = enc.astype(jnp.bfloat16) if cast_bf16 else enc
            d = jnp.maximum(
                jnp.dot(w[2], ec, preferred_element_type=jnp.float32) + b_ref[2], 0.0)
            dc = d.astype(jnp.bfloat16) if cast_bf16 else d
            dec_ref[s] = _sigmoid(
                jnp.dot(w[3], dc, preferred_element_type=jnp.float32) + b_ref[3])

            # ---- per-channel sum of encoded over this tile's valid pixels ----
            enc_r = jnp.where(keep, enc, 0.0) if needs_mask else enc
            rho_sum = rho_sum + jnp.sum(enc_r, axis=1, keepdims=True)[None]

        rho_ref[...] += rho_sum

    return kernel


# ----------------------------------------------------------------------------
# Tiling / VMEM heuristics
# ----------------------------------------------------------------------------
def _vmem_capacity_bytes():
    """Physical VMEM of the current generation (128 MiB v5e/v6e, 64 MiB v7x)."""
    try:
        info = pltpu.get_tpu_info()
        for attr in ("vmem_capacity_bytes", "vmem_size_bytes"):
            v = getattr(info, attr, None)
            if v:
                return int(v)
    except Exception:
        pass
    return 64 << 20  # conservative (v7x-sized) fallback


def _pick_pixel_tile(P, C, max_tile_bytes):
    """Largest pixel tile under the budget: whole row if it fits, otherwise the
    biggest 128-multiple under budget (tail tile masked in-kernel)."""
    if C * P * 4 <= max_tile_bytes:
        return P
    t = (max_tile_bytes // (C * 4)) // 128 * 128
    return max(t, 128)


def _pick_sample_block(N, per_sample_bytes, max_block_bytes, target_bytes=512 << 10):
    """Number of samples per grid step.  Must divide N; keeps >= 2 blocks along
    the sample axis when N >= 2 (v7x has two TensorCores)."""
    if N <= 1:
        return 1
    cap = max(1, N // 2)                                        # >= 2 sample blocks
    cap = min(cap, max(1, max_block_bytes // max(per_sample_bytes, 1)))
    cap = min(cap, max(1, -(-target_bytes // max(per_sample_bytes, 1))))
    nb = 1
    for d in range(1, cap + 1):
        if N % d == 0:
            nb = d
    return nb


# ----------------------------------------------------------------------------
# Wrapper
# ----------------------------------------------------------------------------
def sparse_autoencoder_forward(x_nchw, params, *,
                               sparsity_lambda=1e-4, sparsity_target=0.05):
    """x_nchw: (N, C, H, W) float32.  Returns (decoded_nchw, sparsity_loss)."""
    N, C, H, W = x_nchw.shape
    P = H * W
    w_all, b_all = params                        # (4, C, C), (4, C, 1)

    # NCHW -> (N, C, H*W): contiguous reshape, no transpose / extra HBM pass.
    x3d = x_nchw.reshape(N, C, P)

    # --- generation-aware, weight-aware VMEM budget ---------------------------
    vmem_cap = _vmem_capacity_bytes()
    weight_bytes = (4 * C * C + 4 * C) * 4
    single_buffer_weights = weight_bytes >= (1 << 20)          # only matters for big C
    wbuf = 1 if single_buffer_weights else 2
    avail = max(int(vmem_cap * 0.80) - wbuf * weight_bytes - (2 << 20), 4 << 20)
    # ~12x covers: double-buffered x & dec tiles + h/enc/d/dec f32 intermediates
    # + bf16 operand copies, per grid step.
    max_block_bytes = avail // 12

    tile_p = _pick_pixel_tile(P, C, max_block_bytes)
    grid_t = pl.cdiv(P, tile_p)

    nb = 1
    if grid_t == 1:                                            # payload still small? block samples
        nb = _pick_sample_block(N, C * tile_p * 4, max_block_bytes)
    n_blk = N // nb

    block_bytes = nb * C * tile_p * 4
    vmem_limit = int(min(max(wbuf * weight_bytes + 12 * block_bytes + (4 << 20), 32 << 20),
                         int(vmem_cap * 0.90)))

    # --- BlockSpecs ------------------------------------------------------------
    x_kwargs = {}
    if grid_t * n_blk >= 8 and block_bytes <= (1 << 20):
        # many tiny steps: deepen input pipelining to hide DMA latency
        x_kwargs = dict(pipeline_mode=pl.Buffered(3))
    w_kwargs = {}
    if single_buffer_weights:
        # grid-invariant slab: fetched once, no need to double-buffer it
        w_kwargs = dict(pipeline_mode=pl.Buffered(1))

    x_spec = pl.BlockSpec((nb, C, tile_p), lambda n, t: (n, 0, t), **x_kwargs)
    w_spec = pl.BlockSpec((4, C, C), lambda n, t: (0, 0, 0), **w_kwargs)
    b_spec = pl.BlockSpec((4, C, 1), lambda n, t: (0, 0, 0), **w_kwargs)
    dec_spec = pl.BlockSpec((nb, C, tile_p), lambda n, t: (n, 0, t))
    rho_spec = pl.BlockSpec((1, C, 1), lambda n, t: (n, 0, 0))   # resident across t

    kernel = _make_sae_kernel(P, tile_p, nb, cast_bf16=True)

    dec3d, rho_part = pl.pallas_call(
        kernel,
        out_shape=(jax.ShapeDtypeStruct((N, C, P), jnp.float32),
                   jax.ShapeDtypeStruct((n_blk, C, 1), jnp.float32)),
        grid_spec=pltpu.PrefetchScalarGridSpec(
            num_scalar_prefetch=0,
            grid=(n_blk, grid_t),
            in_specs=[x_spec, w_spec, b_spec],
            out_specs=[dec_spec, rho_spec],
        ),
        compiler_params=pltpu.CompilerParams(
            dimension_semantics=("parallel", "arbitrary"),
            vmem_limit_bytes=vmem_limit),
    )(x3d, w_all, b_all)

    decoded = dec3d.reshape(N, C, H, W)

    # Sparsity penalty epilogue (O(C) scalar math, kept in plain JAX).
    # Matches the PyTorch reference exactly:
    #   rho_hat = mean(encoded, dim=[0,2,3]); clamp(rho_hat, eps, 1-eps);
    #   KL with eps in num & denom; clamp(kl, max=100); lambda * mean(kl).
    eps = 1e-7
    rho = jnp.float32(sparsity_target)
    rho_hat = rho_part.sum(axis=0)[:, 0] / jnp.float32(N * P)    # (C,)
    rho_hat = jnp.clip(rho_hat, eps, 1.0 - eps)
    kl = (rho * jnp.log((rho + eps) / (rho_hat + eps))
          + (1.0 - rho) * jnp.log((1.0 - rho + eps) / (1.0 - rho_hat + eps)))
    kl = jnp.minimum(kl, 100.0)
    loss = jnp.float32(sparsity_lambda) * jnp.mean(kl)
    return decoded, loss


# ----------------------------------------------------------------------------
# Params + pure-JAX reference
# ----------------------------------------------------------------------------
def init_params(key, in_channels, gain=0.1):
    """xavier_uniform(gain=0.1) weights stored as (C_out, C_in), zero biases,
    fused into a (4, C, C) weight slab and a (4, C, 1) bias slab:
    order = [enc_conv1, enc_conv2, dec_conv1, dec_conv2]."""
    C = in_channels
    fan_in = fan_out = C                           # 1x1 conv
    bound = gain * (6.0 / (fan_in + fan_out)) ** 0.5
    w_all = jax.random.uniform(key, (4, C, C), jnp.float32, -bound, bound)
    b_all = jnp.zeros((4, C, 1), jnp.float32)
    return w_all, b_all


def _reference(x, params, sparsity_lambda=1e-4, sparsity_target=0.05):
    """Pure-JAX forward used only to validate the kernel output."""
    w, b = params
    N, C, H, W = x.shape
    z = x.reshape(N, C, H * W)

    def conv(v, k):
        return jnp.einsum("oc,ncp->nop", w[k], v,
                          precision=jax.lax.Precision.HIGHEST) + b[k][None]

    h = jax.nn.relu(conv(z, 0))
    enc = jax.nn.sigmoid(conv(h, 1))
    d = jax.nn.relu(conv(enc, 2))
    dec = jax.nn.sigmoid(conv(d, 3))

    eps = 1e-7
    rho = sparsity_target
    rho_hat = jnp.clip(enc.mean(axis=(0, 2)), eps, 1.0 - eps)
    kl = (rho * jnp.log((rho + eps) / (rho_hat + eps))
          + (1.0 - rho) * jnp.log((1.0 - rho + eps) / (1.0 - rho_hat + eps)))
    kl = jnp.minimum(kl, 100.0)
    return dec.reshape(N, C, H, W), sparsity_lambda * jnp.mean(kl)


if __name__ == "__main__":
    N, C, H, W = 2, 4, 16, 16
    key = jax.random.PRNGKey(0)
    kx, kp = jax.random.split(key)
    x = jax.random.normal(kx, (N, C, H, W), jnp.float32)
    params = init_params(kp, C)

    decoded, loss = sparse_autoencoder_forward(x, params)
    jax.block_until_ready((decoded, loss))

    # sanity: shapes match the PyTorch module's outputs
    assert decoded.shape == (N, C, H, W)
    assert loss.shape == ()

    # correctness vs a pure-JAX (f32, HIGHEST precision) reference; kernel uses
    # bf16 MXU operands with f32 accumulation, hence the slightly loose atol.
    ref_dec, ref_loss = _reference(x, params)
    assert bool(jnp.allclose(decoded, ref_dec, atol=1e-2, rtol=1e-2)), "decoded mismatch"
    assert bool(jnp.allclose(loss, ref_loss, atol=1e-5, rtol=5e-2)), "loss mismatch"

    print("KERNEL_OK")
</pallas_src>

<mosaic_0001>
module attributes {stable_mosaic.version = 11 : i64} {
  func.func @kernel(%arg0: i32, %arg1: i32, %arg2: memref<1x4x256xf32, #tpu.memory_space<vmem>>, %arg3: memref<4x4x4xf32, #tpu.memory_space<vmem>>, %arg4: memref<4x4x1xf32, #tpu.memory_space<vmem>>, %arg5: memref<1x4x256xf32, #tpu.memory_space<vmem>>, %arg6: memref<1x4x1xf32, #tpu.memory_space<vmem>>) attributes {dimension_semantics = [#tpu.dimension_semantics<parallel>, #tpu.dimension_semantics<arbitrary>], iteration_bounds = array<i64: 2, 1>, scalar_prefetch = 0 : i64, scratch_operands = 0 : i64, tpu.core_type = #tpu.core_type<tc>, window_params = [{transform_indices = @transform_0, window_bounds = array<i64: 1, 4, 256>}, {pipeline_mode = #tpu.pipeline_mode<synchronous>, transform_indices = @transform_1, window_bounds = array<i64: 4, 4, 4>}, {pipeline_mode = #tpu.pipeline_mode<synchronous>, transform_indices = @transform_2, window_bounds = array<i64: 4, 4, 1>}, {transform_indices = @transform_3, window_bounds = array<i64: 1, 4, 256>}, {transform_indices = @transform_4, window_bounds = array<i64: 1, 4, 1>}]} {
    %c0_i32 = arith.constant 0 : i32
    %0 = arith.cmpi eq, %arg1, %c0_i32 : i32
    %1 = arith.extui %0 : i1 to i32
    %c0_i32_0 = arith.constant 0 : i32
    %2 = arith.cmpi ne, %1, %c0_i32_0 : i32
    scf.if %2 {
      %cst_37 = arith.constant 0.000000e+00 : f32
      %68 = vector.broadcast %cst_37 : f32 to vector<1x4x1xf32>
      %c0_38 = arith.constant 0 : index
      %c0_39 = arith.constant 0 : index
      %c0_40 = arith.constant 0 : index
      %69 = vector.load %arg6[%c0_38, %c0_39, %c0_40] : memref<1x4x1xf32, #tpu.memory_space<vmem>>, vector<1x4x1xf32>
      tpu.vector_store %arg6[%c0_38, %c0_39, %c0_40], %68 {strides = array<i32>} : memref<1x4x1xf32, #tpu.memory_space<vmem>>, vector<1x4x1xf32>,
    } else {
    }
    %c0 = arith.constant 0 : index
    %c0_1 = arith.constant 0 : index
    %c0_2 = arith.constant 0 : index
    %3 = vector.load %arg3[%c0, %c0_1, %c0_2] : memref<4x4x4xf32, #tpu.memory_space<vmem>>, vector<4x4x4xf32>
    %4 = arith.truncf %3 : vector<4x4x4xf32> to vector<4x4x4xbf16>
    %cst = arith.constant 0.000000e+00 : f32
    %5 = vector.broadcast %cst : f32 to vector<1x4x1xf32>
    %c0_3 = arith.constant 0 : index
    %c0_4 = arith.constant 0 : index
    %c0_5 = arith.constant 0 : index
    %6 = vector.load %arg2[%c0_3, %c0_4, %c0_5] : memref<1x4x256xf32, #tpu.memory_space<vmem>>, vector<1x4x256xf32>
    %7 = vector.shape_cast %6 : vector<1x4x256xf32> to vector<4x256xf32>
    %8 = arith.truncf %7 : vector<4x256xf32> to vector<4x256xbf16>
    %9 = vector.extract_strided_slice %4 {offsets = [0, 0, 0], sizes = [1, 4, 4], strides = [1, 1, 1]} : vector<4x4x4xbf16> to vector<1x4x4xbf16>
    %10 = vector.shape_cast %9 : vector<1x4x4xbf16> to vector<4x4xbf16>
    %cst_6 = arith.constant dense<0.000000e+00> : vector<4x256xf32>
    %11 = tpu.matmul %10, %8, %cst_6 {dimension_numbers = #tpu.dot_dimension_numbers<[1], [0], [0], [1], [0, 0, 1, 1], [], []>} : vector<4x4xbf16>, vector<4x256xbf16>, vector<4x256xf32> -> vector<4x256xf32>
    %c0_7 = arith.constant 0 : index
    %c0_8 = arith.constant 0 : index
    %c0_9 = arith.constant 0 : index
    %12 = vector.load %arg4[%c0_7, %c0_8, %c0_9] : memref<4x4x1xf32, #tpu.memory_space<vmem>>, vector<1x4x1xf32>
    %13 = vector.shape_cast %12 : vector<1x4x1xf32> to vector<4x1xf32>
    %14 = vector.broadcast %13 : vector<4x1xf32> to vector<4x256xf32>
    %15 = arith.addf %11, %14 : vector<4x256xf32>
    %cst_10 = arith.constant 0.000000e+00 : f32
    %16 = vector.broadcast %cst_10 : f32 to vector<4x256xf32>
    %17 = arith.maximumf %15, %16 : vector<4x256xf32>
    %18 = arith.truncf %17 : vector<4x256xf32> to vector<4x256xbf16>
    %19 = vector.extract_strided_slice %4 {offsets = [1, 0, 0], sizes = [1, 4, 4], strides = [1, 1, 1]} : vector<4x4x4xbf16> to vector<1x4x4xbf16>
    %20 = vector.shape_cast %19 : vector<1x4x4xbf16> to vector<4x4xbf16>
    %cst_11 = arith.constant dense<0.000000e+00> : vector<4x256xf32>
    %21 = tpu.matmul %20, %18, %cst_11 {dimension_numbers = #tpu.dot_dimension_numbers<[1], [0], [0], [1], [0, 0, 1, 1], [], []>} : vector<4x4xbf16>, vector<4x256xbf16>, vector<4x256xf32> -> vector<4x256xf32>
    %c1 = arith.constant 1 : index
    %c0_12 = arith.constant 0 : index
    %c0_13 = arith.constant 0 : index
    %22 = vector.load %arg4[%c1, %c0_12, %c0_13] : memref<4x4x1xf32, #tpu.memory_space<vmem>>, vector<1x4x1xf32>
    %23 = vector.shape_cast %22 : vector<1x4x1xf32> to vector<4x1xf32>
    %24 = vector.broadcast %23 : vector<4x1xf32> to vector<4x256xf32>
    %25 = arith.addf %21, %24 : vector<4x256xf32>
    %cst_14 = arith.constant 5.000000e-01 : f32
    %26 = vector.broadcast %cst_14 : f32 to vector<4x256xf32>
    %27 = arith.mulf %26, %25 : vector<4x256xf32>
    %28 = math.tanh %27 : vector<4x256xf32>
    %cst_15 = arith.constant 5.000000e-01 : f32
    %29 = vector.broadcast %cst_15 : f32 to vector<4x256xf32>
    %30 = arith.mulf %29, %28 : vector<4x256xf32>
    %cst_16 = arith.constant 5.000000e-01 : f32
    %31 = vector.broadcast %cst_16 : f32 to vector<4x256xf32>
    %32 = arith.addf %30, %31 : vector<4x256xf32>
    %33 = arith.truncf %32 : vector<4x256xf32> to vector<4x256xbf16>
    %34 = vector.extract_strided_slice %4 {offsets = [2, 0, 0], sizes = [1, 4, 4], strides = [1, 1, 1]} : vector<4x4x4xbf16> to vector<1x4x4xbf16>
    %35 = vector.shape_cast %34 : vector<1x4x4xbf16> to vector<4x4xbf16>
    %cst_17 = arith.constant dense<0.000000e+00> : vector<4x256xf32>
    %36 = tpu.matmul %35, %33, %cst_17 {dimension_numbers = #tpu.dot_dimension_numbers<[1], [0], [0], [1], [0, 0, 1, 1], [], []>} : vector<4x4xbf16>, vector<4x256xbf16>, vector<4x256xf32> -> vector<4x256xf32>
    %c2 = arith.constant 2 : index
    %c0_18 = arith.constant 0 : index
    %c0_19 = arith.constant 0 : index
    %37 = vector.load %arg4[%c2, %c0_18, %c0_19] : memref<4x4x1xf32, #tpu.memory_space<vmem>>, vector<1x4x1xf32>
    %38 = vector.shape_cast %37 : vector<1x4x1xf32> to vector<4x1xf32>
    %39 = vector.broadcast %38 : vector<4x1xf32> to vector<4x256xf32>
    %40 = arith.addf %36, %39 : vector<4x256xf32>
    %cst_20 = arith.constant 0.000000e+00 : f32
    %41 = vector.broadcast %cst_20 : f32 to vector<4x256xf32>
    %42 = arith.maximumf %40, %41 : vector<4x256xf32>
    %43 = arith.truncf %42 : vector<4x256xf32> to vector<4x256xbf16>
    %44 = vector.extract_strided_slice %4 {offsets = [3, 0, 0], sizes = [1, 4, 4], strides = [1, 1, 1]} : vector<4x4x4xbf16> to vector<1x4x4xbf16>
    %45 = vector.shape_cast %44 : vector<1x4x4xbf16> to vector<4x4xbf16>
    %cst_21 = arith.constant dense<0.000000e+00> : vector<4x256xf32>
    %46 = tpu.matmul %45, %43, %cst_21 {dimension_numbers = #tpu.dot_dimension_numbers<[1], [0], [0], [1], [0, 0, 1, 1], [], []>} : vector<4x4xbf16>, vector<4x256xbf16>, vector<4x256xf32> -> vector<4x256xf32>
    %c3 = arith.constant 3 : index
    %c0_22 = arith.constant 0 : index
    %c0_23 = arith.constant 0 : index
    %47 = vector.load %arg4[%c3, %c0_22, %c0_23] : memref<4x4x1xf32, #tpu.memory_space<vmem>>, vector<1x4x1xf32>
    %48 = vector.shape_cast %47 : vector<1x4x1xf32> to vector<4x1xf32>
    %49 = vector.broadcast %48 : vector<4x1xf32> to vector<4x256xf32>
    %50 = arith.addf %46, %49 : vector<4x256xf32>
    %cst_24 = arith.constant 5.000000e-01 : f32
    %51 = vector.broadcast %cst_24 : f32 to vector<4x256xf32>
    %52 = arith.mulf %51, %50 : vector<4x256xf32>
    %53 = math.tanh %52 : vector<4x256xf32>
    %cst_25 = arith.constant 5.000000e-01 : f32
    %54 = vector.broadcast %cst_25 : f32 to vector<4x256xf32>
    %55 = arith.mulf %54, %53 : vector<4x256xf32>
    %cst_26 = arith.constant 5.000000e-01 : f32
    %56 = vector.broadcast %cst_26 : f32 to vector<4x256xf32>
    %57 = arith.addf %55, %56 : vector<4x256xf32>
    %c0_27 = arith.constant 0 : index
    %c0_28 = arith.constant 0 : index
    %c0_29 = arith.constant 0 : index
    %58 = vector.load %arg5[%c0_27, %c0_28, %c0_29] : memref<1x4x256xf32, #tpu.memory_space<vmem>>, vector<1x4x256xf32>
    %59 = vector.shape_cast %58 : vector<1x4x256xf32> to vector<4x256xf32>
    %60 = vector.shape_cast %57 : vector<4x256xf32> to vector<1x4x256xf32>
    tpu.vector_store %arg5[%c0_27, %c0_28, %c0_29], %60 {strides = array<i32>} : memref<1x4x256xf32, #tpu.memory_space<vmem>>, vector<1x4x256xf32>,
    %cst_30 = arith.constant dense<0.000000e+00> : vector<4xf32>
    %61 = vector.multi_reduction <add>, %32, %cst_30 [1] : vector<4x256xf32> to vector<4xf32>
    %62 = vector.shape_cast %61 : vector<4xf32> to vector<4x1xf32>
    %63 = vector.shape_cast %62 : vector<4x1xf32> to vector<1x4x1xf32>
    %64 = arith.addf %5, %63 : vector<1x4x1xf32>
    %c0_31 = arith.constant 0 : index
    %c0_32 = arith.constant 0 : index
    %c0_33 = arith.constant 0 : index
    %65 = vector.load %arg6[%c0_31, %c0_32, %c0_33] : memref<1x4x1xf32, #tpu.memory_space<vmem>>, vector<1x4x1xf32>
    %66 = arith.addf %65, %64 : vector<1x4x1xf32>
    %c0_34 = arith.constant 0 : index
    %c0_35 = arith.constant 0 : index
    %c0_36 = arith.constant 0 : index
    %67 = vector.load %arg6[%c0_34, %c0_35, %c0_36] : memref<1x4x1xf32, #tpu.memory_space<vmem>>, vector<1x4x1xf32>
    tpu.vector_store %arg6[%c0_34, %c0_35, %c0_36], %66 {strides = array<i32>} : memref<1x4x1xf32, #tpu.memory_space<vmem>>, vector<1x4x1xf32>,
    return
  }
  func.func @transform_0(%arg0: i32, %arg1: i32) -> (i32, i32, i32) {
    %c0_i32 = arith.constant 0 : i32
    %c0_i32_0 = arith.constant 0 : i32
    return %arg0, %c0_i32, %arg1 : i32, i32, i32
  }
  func.func @transform_1(%arg0: i32, %arg1: i32) -> (i32, i32, i32) {
    %c0_i32 = arith.constant 0 : i32
    %c0_i32_0 = arith.constant 0 : i32
    %c0_i32_1 = arith.constant 0 : i32
    %c0_i32_2 = arith.constant 0 : i32
    return %c0_i32, %c0_i32_0, %c0_i32_1 : i32, i32, i32
  }
  func.func @transform_2(%arg0: i32, %arg1: i32) -> (i32, i32, i32) {
    %c0_i32 = arith.constant 0 : i32
    %c0_i32_0 = arith.constant 0 : i32
    %c0_i32_1 = arith.constant 0 : i32
    %c0_i32_2 = arith.constant 0 : i32
    return %c0_i32, %c0_i32_0, %c0_i32_1 : i32, i32, i32
  }
  func.func @transform_3(%arg0: i32, %arg1: i32) -> (i32, i32, i32) {
    %c0_i32 = arith.constant 0 : i32
    %c0_i32_0 = arith.constant 0 : i32
    return %arg0, %c0_i32, %arg1 : i32, i32, i32
  }
  func.func @transform_4(%arg0: i32, %arg1: i32) -> (i32, i32, i32) {
    %c0_i32 = arith.constant 0 : i32
    %c0_i32_0 = arith.constant 0 : i32
    %c0_i32_1 = arith.constant 0 : i32
    return %arg0, %c0_i32, %c0_i32_0 : i32, i32, i32
  }
}

</mosaic_0001>

<llo_original>
// kernel: tpu_custom_call.1
$region0: #{tpu_custom_call.1}
  #allocation0 [shape = 'u32[]', space=smem, size = 0x4, offset = 0x4, fixed_abs, tag = 'smem constant byte address 0x4 - core index']
  #allocation1 [shape = 'u32[144,128]{1,0:T(1,128)}', space=vmem, size = 0x12000, scoped, tag = 'internal scratch']
  %s0 = inlined_call_operand.vmem [shape: f32[2,4,256], index: 0, kind: input, shape index: {}]
  %s1 = inlined_call_operand.hbm [shape: f32[4,4,4], index: 1, kind: input, shape index: {}]
  %s2 = inlined_call_operand.vmem [shape: f32[4,4,1], index: 2, kind: input, shape index: {}]
  %s3 = inlined_call_operand.hbm [shape: f32[2,4,256], index: 3, kind: output, shape index: {0}]
  %s4 = inlined_call_operand.vmem [shape: f32[2,4,1], index: 4, kind: output, shape index: {1}]
  %5 = xla_tuple %s3, %s4
  %s6 = sld [smem:[#allocation0]]
  $region61: #{tpu_custom_call.1} parent=0
    _
  %s8 = ssub.s32 1, %s6
  %s9 = scalar_select 0, %s8, %s6
  $region1: #{tpu_custom_call.1} parent=0
    #allocation2 [shape = 'u8[8192]{0}', space=vmem, size = 0x2000, scoped, tag = 'input window, operand 1, single buffered']
    #allocation3 [shape = 's32[2]{0}', space=sflag, size = 0x8, scoped, tag = 'scoped memory for tpu_custom_call.1']
    #allocation4 [shape = 's32[2]{0}', space=sflag, size = 0x8, scoped, tag = 'scoped memory for tpu_custom_call.1']
    #allocation5 [shape = 'u8[8192]{0}', space=vmem, size = 0x2000, scoped, tag = 'output window, operand 0']
    %10 = vsyncpa [#allocation3], 0
    %11 = vsyncpa [#allocation4], 0
    %s12 = scalar_lea.sflag [#allocation4], 1
    %13 = vsyncpa %s12, 0
    loop: start=0, step=1, limit=4
    $region2: #{tpu_custom_call.1} parent=1 // loop_pre_header
      _
    $region3: #{tpu_custom_call.1} parent=1 // loop_header
      %s15 = sphi 0, %s19
      %p16 = scmp.ge.s32.totalorder %s15, 4
      %s22 = sphi 0, %s34
      %s23 = sphi 0, %s30
      %s24 = sphi 0, %s22
      %s25 = sphi 0, %s23
      %s26 = sphi 0, %s24
      %s27 = sphi 0, %s25
      %s39 = sphi 0, %s41
      %s42 = sphi 0, %s39
      %s43 = sphi 0, %s42
      %s59 = sphi 0, %s43
      %s63 = sphi 0, %s63
      %s65 = sphi 0, %s63
      %s66 = sphi 0, %s65
      %s80 = sphi 0, %s66
      %s84 = sphi 0, %s84
      %s86 = sphi 0, %s84
      %s87 = sphi 0, %s86
      %s101 = sphi 0, %s87
      %s109 = sphi 0, %s111
      %s112 = sphi 0, %s109
      %s113 = sphi 0, %s112
      %s129 = sphi 0, %s113
      %s135 = sphi 0, %s137
      %s138 = sphi 0, %s135
      %s139 = sphi 0, %s138
      %s155 = sphi 0, %s139
    $region4: #{tpu_custom_call.1} parent=1 // loop_header_branch
      %18 = sbr.rel (%p16) target = $region8
    $region5: #{tpu_custom_call.1} parent=1 // loop_body
      %s20 = ssub.s32 %s15, 1
      %s21 = ssub.s32 %s15, 2
      %s28 = sadd.s32 1, %s23
      %p29 = scmp.ge.s32.totalorder %s28, 1
      %s30 = scalar_select %p29, 0, %s28
      %s31 = sadd.s32 1, %s22
      %s32 = scalar_select %p29, %s31, %s22
      %p33 = scmp.ge.s32.totalorder %s32, 2
      %s34 = scalar_select %p33, 0, %s32
      %s35 = ssub.s32 %s22, %s34
      %s36 = ssub.s32 %s23, %s30
      %s37 = sor.u32 %s35, %s36
      %p38 = scmp.eq.s32.totalorder %s37, 0
      %s40 = sadd.s32 %s39, 1
      %s41 = scalar_select %p38, %s39, %s40
      %p44 = pneg %p38
      %p45 = scmp.eq.s32.totalorder %s15, 1
      %p46 = por %p44, %p45
      %p47 = scmp.ne.s32.totalorder %s39, %s42
      %p48 = scmp.eq.s32.totalorder %s15, 0
      %p49 = por %p47, %p48
      %p50 = scmp.ne.s32.totalorder %s39, %s42
      %p51 = scmp.eq.s32.totalorder %s20, 1
      %p52 = por %p50, %p51
      %p53 = scmp.ne.s32.totalorder %s42, %s43
      %p54 = scmp.eq.s32.totalorder %s20, 0
      %p55 = por %p53, %p54
      %p56 = scmp.ne.s32.totalorder %s42, %s43
      %p57 = scmp.eq.s32.totalorder %s21, 1
      %p58 = por %p56, %p57
      %p60 = scmp.ne.s32.totalorder %s43, %s59
      %p61 = scmp.eq.s32.totalorder %s21, 0
      %p62 = por %p60, %p61
      %s64 = sadd.s32 %s63, 1
      %p67 = scmp.eq.s32.totalorder %s15, 1
      %p68 = scmp.ne.s32.totalorder %s63, %s65
      %p69 = scmp.eq.s32.totalorder %s15, 0
      %p70 = por %p68, %p69
      %p71 = scmp.ne.s32.totalorder %s63, %s65
      %p72 = scmp.eq.s32.totalorder %s20, 1
      %p73 = por %p71, %p72
      %p74 = scmp.ne.s32.totalorder %s65, %s66
      %p75 = scmp.eq.s32.totalorder %s20, 0
      %p76 = por %p74, %p75
      %p77 = scmp.ne.s32.totalorder %s65, %s66
      %p78 = scmp.eq.s32.totalorder %s21, 1
      %p79 = por %p77, %p78
      %p81 = scmp.ne.s32.totalorder %s66, %s80
      %p82 = scmp.eq.s32.totalorder %s21, 0
      %p83 = por %p81, %p82
      %s85 = sadd.s32 %s84, 1
      %p88 = scmp.eq.s32.totalorder %s15, 1
      %p89 = scmp.ne.s32.totalorder %s84, %s86
      %p90 = scmp.eq.s32.totalorder %s15, 0
      %p91 = por %p89, %p90
      %p92 = scmp.ne.s32.totalorder %s84, %s86
      %p93 = scmp.eq.s32.totalorder %s20, 1
      %p94 = por %p92, %p93
      %p95 = scmp.ne.s32.totalorder %s86, %s87
      %p96 = scmp.eq.s32.totalorder %s20, 0
      %p97 = por %p95, %p96
      %p98 = scmp.ne.s32.totalorder %s86, %s87
      %p99 = scmp.eq.s32.totalorder %s21, 1
      %p100 = por %p98, %p99
      %p102 = scmp.ne.s32.totalorder %s87, %s101
      %p103 = scmp.eq.s32.totalorder %s21, 0
      %p104 = por %p102, %p103
      %s105 = ssub.s32 %s22, %s34
      %s106 = ssub.s32 %s23, %s30
      %s107 = sor.u32 %s105, %s106
      %p108 = scmp.eq.s32.totalorder %s107, 0
      %s110 = sadd.s32 %s109, 1
      %s111 = scalar_select %p108, %s109, %s110
      %p114 = pneg %p108
      %p115 = scmp.eq.s32.totalorder %s15, 1
      %p116 = por %p114, %p115
      %p117 = scmp.ne.s32.totalorder %s109, %s112
      %p118 = scmp.eq.s32.totalorder %s15, 0
      %p119 = por %p117, %p118
      %p120 = scmp.ne.s32.totalorder %s109, %s112
      %p121 = scmp.eq.s32.totalorder %s20, 1
      %p122 = por %p120, %p121
      %p123 = scmp.ne.s32.totalorder %s112, %s113
      %p124 = scmp.eq.s32.totalorder %s20, 0
      %p125 = por %p123, %p124
      %p126 = scmp.ne.s32.totalorder %s112, %s113
      %p127 = scmp.eq.s32.totalorder %s21, 1
      %p128 = por %p126, %p127
      %p130 = scmp.ne.s32.totalorder %s113, %s129
      %p131 = scmp.eq.s32.totalorder %s21, 0
      %p132 = por %p130, %p131
      %s133 = ssub.s32 %s22, %s34
      %p134 = scmp.eq.s32.totalorder %s133, 0
      %s136 = sadd.s32 %s135, 1
      %s137 = scalar_select %p134, %s135, %s136
      %p140 = pneg %p134
      %p141 = scmp.eq.s32.totalorder %s15, 1
      %p142 = por %p140, %p141
      %p143 = scmp.ne.s32.totalorder %s135, %s138
      %p144 = scmp.eq.s32.totalorder %s15, 0
      %p145 = por %p143, %p144
      %p146 = scmp.ne.s32.totalorder %s135, %s138
      %p147 = scmp.eq.s32.totalorder %s20, 1
      %p148 = por %p146, %p147
      %p149 = scmp.ne.s32.totalorder %s138, %s139
      %p150 = scmp.eq.s32.totalorder %s20, 0
      %p151 = por %p149, %p150
      %p152 = scmp.ne.s32.totalorder %s138, %s139
      %p153 = scmp.eq.s32.totalorder %s21, 1
      %p154 = por %p152, %p153
      %p156 = scmp.ne.s32.totalorder %s139, %s155
      %p157 = scmp.eq.s32.totalorder %s21, 0
      %p158 = por %p156, %p157
      %p159 = scmp.le.s32.totalorder 1, %s15
      %p160 = scmp.lt.s32.totalorder %s15, 3
      %p161 = pnand %p159, %p160
      %p162 = pneg %p161
      // Predicated region
      $region9: #{tpu_custom_call.1} parent=5 // pred_check
        _
      $region10: #{tpu_custom_call.1} parent=5 // pred_check_branch
        %164 = sbr.rel (%p161) target = $region12
      $region11: #{tpu_custom_call.1} parent=5 // pred_region
        %s165 = ssub.s32 %s15, 1
        // Predicated region
        $region13: #{tpu_custom_call.1} parent=11 // pred_check
          %p166 = pneg %p76
        $region14: #{tpu_custom_call.1} parent=11 // pred_check_branch
          %168 = sbr.rel (%p166) target = $region16
        $region15: #{tpu_custom_call.1} parent=11 // pred_region
          %s170 = ssub.s32 256, 256
          %171 = vsyncadd [#allocation3], %s170
          %s172 = sshll.u32 [#allocation2], 4
          %s173 = int_to_ptr.vmem [resolvable:$true] %s172
          %178 = dma.hbm_to_vmem [thread:$0]  %s1, 256, %s173, [#allocation3], 64, 64, 4
        $region16: #{tpu_custom_call.1} parent=11 // pred_fallthru
          _
        // Predicated region
        $region17: #{tpu_custom_call.1} parent=11 // pred_check
          %p179 = pneg %p97
        $region18: #{tpu_custom_call.1} parent=11 // pred_check_branch
          %181 = sbr.rel (%p179) target = $region20
        $region19: #{tpu_custom_call.1} parent=11 // pred_region
          _
        $region20: #{tpu_custom_call.1} parent=11 // pred_fallthru
          _
      $region12: #{tpu_custom_call.1} parent=5 // pred_fallthru
        _
      %p182 = scmp.lt.s32.totalorder %s15, 2
      // Predicated region
      $region21: #{tpu_custom_call.1} parent=5 // pred_check
        %p183 = pneg %p182
      $region22: #{tpu_custom_call.1} parent=5 // pred_check_branch
        %185 = sbr.rel (%p183) target = $region24
      $region23: #{tpu_custom_call.1} parent=5 // pred_region
        // Predicated region
        $region25: #{tpu_custom_call.1} parent=23 // pred_check
          %p186 = pneg %p49
        $region26: #{tpu_custom_call.1} parent=23 // pred_check_branch
          %188 = sbr.rel (%p186) target = $region28
        $region27: #{tpu_custom_call.1} parent=23 // pred_region
          %s189 = smul.u32 2, %s23
          %p190 = scmp.lt.s32.totalorder %s22, 1
          %s191 = scalar_select %p190, %s22, 1
          %p192 = scmp.lt.s32.totalorder %s189, 1
          %s193 = scalar_select %p192, %s189, 1
          %s194 = smul.addr %s191, 2
          %s195 = sadd.s32 %s193, %s194
          %s196 = smul.addr %s195, 4
          %s197 = scalar_lea.vmem %s0, %s196
          %s198 = smul.u32 2, %s23
        $region28: #{tpu_custom_call.1} parent=23 // pred_fallthru
          _
      $region24: #{tpu_custom_call.1} parent=5 // pred_fallthru
        _
      %p199 = scmp.le.s32.totalorder 1, %s15
      %p200 = scmp.lt.s32.totalorder %s15, 3
      %p201 = pnand %p199, %p200
      %p202 = pneg %p201
      // Predicated region
      $region29: #{tpu_custom_call.1} parent=5 // pred_check
        _
      $region30: #{tpu_custom_call.1} parent=5 // pred_check_branch
        %204 = sbr.rel (%p201) target = $region32
      $region31: #{tpu_custom_call.1} parent=5 // pred_region
        %s205 = ssub.s32 %s15, 1
        // Predicated region
        $region33: #{tpu_custom_call.1} parent=31 // pred_check
          %p206 = pneg %p76
        $region34: #{tpu_custom_call.1} parent=31 // pred_check_branch
          %208 = sbr.rel (%p206) target = $region36
        $region35: #{tpu_custom_call.1} parent=31 // pred_region
          %209 = dma.done [#allocation3], 256
        $region36: #{tpu_custom_call.1} parent=31 // pred_fallthru
          _
        %s210 = smul.u32 2, %s25
        %p211 = scmp.lt.s32.totalorder %s24, 1
        %s212 = scalar_select %p211, %s24, 1
        %p213 = scmp.lt.s32.totalorder %s210, 1
        %s214 = scalar_select %p213, %s210, 1
        %s215 = smul.addr %s212, 2
        %s216 = sadd.s32 %s214, %s215
        %s217 = smul.addr %s216, 4
        %s218 = scalar_lea.vmem %s0, %s217
        %p219 = pneg %p55
        %p220 = pneg %p52
        %p221 = pneg %p76
        %p222 = pneg %p73
        %p223 = pneg %p97
        %p224 = pneg %p94
        %p225 = pneg %p125
        %p226 = pneg %p122
        %s227 = sand.u32 %s112, 1
        %s228 = scalar_lea.sflag [#allocation4], %s227
        %s229 = sand.u32 %s112, 1
        %s230 = smul.addr %s229, 8
        %s231 = scalar_lea.vmem [#allocation5], %s230
        %p232 = pneg %p151
        %p233 = pneg %p148
        %p234 = scmp.lt.s32.totalorder %s24, 1
        %s235 = scalar_select %p234, %s24, 1
        %s236 = smul.addr %s235, 4
        %s237 = scalar_lea.vmem %s4, %s236
        %s238 = smul.u32 2, %s25
        %p239 = scmp.lt.s32.totalorder %s24, 1
        %s240 = scalar_select %p239, %s24, 1
        %p241 = scmp.lt.s32.totalorder %s238, 1
        %s242 = scalar_select %p241, %s238, 1
        %s243 = smul.addr %s240, 2
        %s244 = sadd.s32 %s242, %s243
        %s245 = smul.addr %s244, 4
        %s246 = scalar_lea.vmem %s0, %s245
        %s247 = smul.u32 2, %s25
        %s248 = smul.u32 2, %s25
        %p249 = scmp.lt.s32.totalorder %s24, 1
        %s250 = scalar_select %p249, %s24, 1
        %s251 = smul.addr %s250, 4
        %s252 = scalar_lea.vmem %s4, %s251
        %p254 = scmp.eq.s32.totalorder %s25, 0
        // Predicated region
        $region37: #{tpu_custom_call.1} parent=31 // pred_check
          %p255 = pneg %p254
        $region38: #{tpu_custom_call.1} parent=31 // pred_check_branch
          %257 = sbr.rel (%p255) target = $region40
        $region39: #{tpu_custom_call.1} parent=31 // pred_region
          %vm258 = vcmask 3072
          %259 = vst.msk [vmem:[%s252] sm:$0xf] %vm258, 0.0
        $region40: #{tpu_custom_call.1} parent=31 // pred_fallthru
          _
        %v260 = vld [vmem:[#allocation2] sm:$0xf]
        %v261 = vld [vmem:[#allocation2 + $0x4] sm:$0xf]
        %v262 = vld [vmem:[#allocation2 + $0x8] sm:$0xf]
        %v263 = vld [vmem:[#allocation2 + $0xc] sm:$0xf]
        %v264 = vpack.c.bf16 %v260, %v260
        %v265 = vpack.c.bf16 %v261, %v261
        %v266 = vpack.c.bf16 %v262, %v262
        %v267 = vpack.c.bf16 %v263, %v263
        %v268 = vld [vmem:[%s246] sm:$0xff]
        %v270 = vcombine.high %v268, %v268
        %v272 = vpack.c.bf16 %v268, %v268
        %v273 = vpack.c.bf16 %v270, %v270
        %v274 = vld [vmem:[%s2] sm:$0xf]
        %276 = vset.pattern.permute.xlu0 0
        %277 = vperm.xlu0 %276, %v274
        %v278 = vpop.permute.xlu0 %277
        %vm280 = vcmask 31744
        %v282 = vsel %vm280, %v264, 0
        %vm284 = vcmask 1041408
        %v286 = vsel %vm284, %v272, 0
        %v289 = vsel %vm284, %v273, 0
        %291 = vmatprep.subr.bf16.mxu0 %v289
        %292 = vmatpush1.bf16.msra.mxu0 %v286
        %293 = vmatprep.subr.bf16.mxu0 0
        %294 = vmatpush1.bf16.msra.mxu0 0
        %295 = vmatprep.subr.bf16.mxu0 0
        %296 = vmatpush1.bf16.msra.mxu0 0
        %297 = vmatprep.subr.bf16.mxu0 0
        %298 = vmatpush1.bf16.msra.mxu0 0
        %299 = vmatprep.subr.bf16.mxu0 0
        %300 = vmatpush1.bf16.msra.mxu0 0
        %301 = vmatprep.subr.bf16.mxu0 0
        %302 = vmatpush1.bf16.msra.mxu0 0
        %303 = vmatprep.subr.bf16.mxu0 0
        %304 = vmatpush1.bf16.msra.mxu0 0
        %305 = vmatprep.subr.bf16.mxu0 0
        %306 = vmatpush1.bf16.msra.mxu0 0
        %307 = vmatprep.subr.bf16.mxu0 0
        %308 = vmatpush1.bf16.msra.mxu0 0
        %309 = vmatprep.subr.bf16.mxu0 0
        %310 = vmatpush1.bf16.msra.mxu0 0
        %311 = vmatprep.subr.bf16.mxu0 0
        %312 = vmatpush1.bf16.msra.mxu0 0
        %313 = vmatprep.subr.bf16.mxu0 0
        %314 = vmatpush1.bf16.msra.mxu0 0
        %315 = vmatprep.subr.bf16.mxu0 0
        %316 = vmatpush1.bf16.msra.mxu0 0
        %317 = vmatprep.subr.bf16.mxu0 0
        %318 = vmatpush1.bf16.msra.mxu0 0
        %319 = vmatprep.subr.bf16.mxu0 0
        %320 = vmatpush1.bf16.msra.mxu0 0
        %321 = vmatprep.subr.bf16.mxu0 0
        %322 = vmatpush1.bf16.msra.mxu0 0
        %323 = vmatprep.mubr.bf16.mxu0 0
        %324 = vmatmul.mubr.bf16.gmra.mrb[0].mxu0 %v282
        %v325 = vpop.f32.mrb[0].mxu0
        %v326 = vadd.f32 %v278, %v325
        %v327 = vpop.f32.mrb[0].mxu0
        %v328 = vadd.f32 %v278, %v327
        %v329 = vpop.f32.mrb[0].mxu0
        %v330 = vpop.f32.mrb[0].mxu0
        %331 = vdwg.mxu0
        %v332 = vmax.f32 %v326, 0.0
        %v333 = vmax.f32 %v328, 0.0
        %v334 = vpack.c.bf16 %v332, %v332
        %v335 = vpack.c.bf16 %v333, %v333
        %s336 = scalar_lea.vmem %s2, 4
        %v337 = vld [vmem:[%s336] sm:$0xf]
        %339 = vset.pattern.permute.xlu0 0
        %340 = vperm.xlu0 %339, %v337
        %v341 = vpop.permute.xlu0 %340
        %v344 = vsel %vm280, %v265, 0
        %v347 = vsel %vm284, %v334, 0
        %v350 = vsel %vm284, %v335, 0
        %352 = vmatprep.subr.bf16.mxu0 %v350
        %353 = vmatpush1.bf16.msra.mxu0 %v347
        %354 = vmatprep.subr.bf16.mxu0 0
        %355 = vmatpush1.bf16.msra.mxu0 0
        %356 = vmatprep.subr.bf16.mxu0 0
        %357 = vmatpush1.bf16.msra.mxu0 0
        %358 = vmatprep.subr.bf16.mxu0 0
        %359 = vmatpush1.bf16.msra.mxu0 0
        %360 = vmatprep.subr.bf16.mxu0 0
        %361 = vmatpush1.bf16.msra.mxu0 0
        %362 = vmatprep.subr.bf16.mxu0 0
        %363 = vmatpush1.bf16.msra.mxu0 0
        %364 = vmatprep.subr.bf16.mxu0 0
        %365 = vmatpush1.bf16.msra.mxu0 0
        %366 = vmatprep.subr.bf16.mxu0 0
        %367 = vmatpush1.bf16.msra.mxu0 0
        %368 = vmatprep.subr.bf16.mxu0 0
        %369 = vmatpush1.bf16.msra.mxu0 0
        %370 = vmatprep.subr.bf16.mxu0 0
        %371 = vmatpush1.bf16.msra.mxu0 0
        %372 = vmatprep.subr.bf16.mxu0 0
        %373 = vmatpush1.bf16.msra.mxu0 0
        %374 = vmatprep.subr.bf16.mxu0 0
        %375 = vmatpush1.bf16.msra.mxu0 0
        %376 = vmatprep.subr.bf16.mxu0 0
        %377 = vmatpush1.bf16.msra.mxu0 0
        %378 = vmatprep.subr.bf16.mxu0 0
        %379 = vmatpush1.bf16.msra.mxu0 0
        %380 = vmatprep.subr.bf16.mxu0 0
        %381 = vmatpush1.bf16.msra.mxu0 0
        %382 = vmatprep.subr.bf16.mxu0 0
        %383 = vmatpush1.bf16.msra.mxu0 0
        %384 = vmatprep.mubr.bf16.mxu0 0
        %385 = vmatmul.mubr.bf16.gmra.mrb[0].mxu0 %v344
        %v386 = vpop.f32.mrb[0].mxu0
        %v387 = vadd.f32 %v341, %v386
        %v388 = vpop.f32.mrb[0].mxu0
        %v389 = vadd.f32 %v341, %v388
        %v390 = vpop.f32.mrb[0].mxu0
        %v391 = vpop.f32.mrb[0].mxu0
        %392 = vdwg.mxu0
        %v393 = vmul.f32 %v387, 0.5
        %v394 = vmul.f32 %v389, 0.5
        %v395 = vtanh.pop %v393
        %v396 = vtanh.pop %v394
        %v397 = vmul.f32 %v395, 0.5
        %v398 = vmul.f32 %v396, 0.5
        %v399 = vadd.f32 %v397, 0.5
        %v400 = vadd.f32 %v398, 0.5
        %v401 = vpack.c.bf16 %v399, %v399
        %v402 = vpack.c.bf16 %v400, %v400
        %s403 = scalar_lea.vmem %s2, 8
        %v404 = vld [vmem:[%s403] sm:$0xf]
        %406 = vset.pattern.permute.xlu0 0
        %407 = vperm.xlu0 %406, %v404
        %v408 = vpop.permute.xlu0 %407
        %v411 = vsel %vm280, %v266, 0
        %v414 = vsel %vm284, %v401, 0
        %v417 = vsel %vm284, %v402, 0
        %419 = vmatprep.subr.bf16.mxu0 %v417
        %420 = vmatpush1.bf16.msra.mxu0 %v414
        %421 = vmatprep.subr.bf16.mxu0 0
        %422 = vmatpush1.bf16.msra.mxu0 0
        %423 = vmatprep.subr.bf16.mxu0 0
        %424 = vmatpush1.bf16.msra.mxu0 0
        %425 = vmatprep.subr.bf16.mxu0 0
        %426 = vmatpush1.bf16.msra.mxu0 0
        %427 = vmatprep.subr.bf16.mxu0 0
        %428 = vmatpush1.bf16.msra.mxu0 0
        %429 = vmatprep.subr.bf16.mxu0 0
        %430 = vmatpush1.bf16.msra.mxu0 0
        %431 = vmatprep.subr.bf16.mxu0 0
        %432 = vmatpush1.bf16.msra.mxu0 0
        %433 = vmatprep.subr.bf16.mxu0 0
        %434 = vmatpush1.bf16.msra.mxu0 0
        %435 = vmatprep.subr.bf16.mxu0 0
        %436 = vmatpush1.bf16.msra.mxu0 0
        %437 = vmatprep.subr.bf16.mxu0 0
        %438 = vmatpush1.bf16.msra.mxu0 0
        %439 = vmatprep.subr.bf16.mxu0 0
        %440 = vmatpush1.bf16.msra.mxu0 0
        %441 = vmatprep.subr.bf16.mxu0 0
        %442 = vmatpush1.bf16.msra.mxu0 0
        %443 = vmatprep.subr.bf16.mxu0 0
        %444 = vmatpush1.bf16.msra.mxu0 0
        %445 = vmatprep.subr.bf16.mxu0 0
        %446 = vmatpush1.bf16.msra.mxu0 0
        %447 = vmatprep.subr.bf16.mxu0 0
        %448 = vmatpush1.bf16.msra.mxu0 0
        %449 = vmatprep.subr.bf16.mxu0 0
        %450 = vmatpush1.bf16.msra.mxu0 0
        %451 = vmatprep.mubr.bf16.mxu0 0
        %452 = vmatmul.mubr.bf16.gmra.mrb[0].mxu0 %v411
        %v453 = vpop.f32.mrb[0].mxu0
        %v454 = vadd.f32 %v408, %v453
        %v455 = vpop.f32.mrb[0].mxu0
        %v456 = vadd.f32 %v408, %v455
        %v457 = vpop.f32.mrb[0].mxu0
        %v458 = vpop.f32.mrb[0].mxu0
        %459 = vdwg.mxu0
        %v460 = vmax.f32 %v454, 0.0
        %v461 = vmax.f32 %v456, 0.0
        %v462 = vpack.c.bf16 %v460, %v460
        %v463 = vpack.c.bf16 %v461, %v461
        %s464 = scalar_lea.vmem %s2, 12
        %v465 = vld [vmem:[%s464] sm:$0xf]
        %467 = vset.pattern.permute.xlu0 0
        %468 = vperm.xlu0 %467, %v465
        %v469 = vpop.permute.xlu0 %468
        %v472 = vsel %vm280, %v267, 0
        %v475 = vsel %vm284, %v462, 0
        %v478 = vsel %vm284, %v463, 0
        %480 = vmatprep.subr.bf16.mxu0 %v478
        %481 = vmatpush1.bf16.msra.mxu0 %v475
        %482 = vmatprep.subr.bf16.mxu0 0
        %483 = vmatpush1.bf16.msra.mxu0 0
        %484 = vmatprep.subr.bf16.mxu0 0
        %485 = vmatpush1.bf16.msra.mxu0 0
        %486 = vmatprep.subr.bf16.mxu0 0
        %487 = vmatpush1.bf16.msra.mxu0 0
        %488 = vmatprep.subr.bf16.mxu0 0
        %489 = vmatpush1.bf16.msra.mxu0 0
        %490 = vmatprep.subr.bf16.mxu0 0
        %491 = vmatpush1.bf16.msra.mxu0 0
        %492 = vmatprep.subr.bf16.mxu0 0
        %493 = vmatpush1.bf16.msra.mxu0 0
        %494 = vmatprep.subr.bf16.mxu0 0
        %495 = vmatpush1.bf16.msra.mxu0 0
        %496 = vmatprep.subr.bf16.mxu0 0
        %497 = vmatpush1.bf16.msra.mxu0 0
        %498 = vmatprep.subr.bf16.mxu0 0
        %499 = vmatpush1.bf16.msra.mxu0 0
        %500 = vmatprep.subr.bf16.mxu0 0
        %501 = vmatpush1.bf16.msra.mxu0 0
        %502 = vmatprep.subr.bf16.mxu0 0
        %503 = vmatpush1.bf16.msra.mxu0 0
        %504 = vmatprep.subr.bf16.mxu0 0
        %505 = vmatpush1.bf16.msra.mxu0 0
        %506 = vmatprep.subr.bf16.mxu0 0
        %507 = vmatpush1.bf16.msra.mxu0 0
        %508 = vmatprep.subr.bf16.mxu0 0
        %509 = vmatpush1.bf16.msra.mxu0 0
        %510 = vmatprep.subr.bf16.mxu0 0
        %511 = vmatpush1.bf16.msra.mxu0 0
        %512 = vmatprep.mubr.bf16.mxu0 0
        %513 = vmatmul.mubr.bf16.gmra.mrb[0].mxu0 %v472
        %v514 = vpop.f32.mrb[0].mxu0
        %v515 = vadd.f32 %v469, %v514
        %v516 = vpop.f32.mrb[0].mxu0
        %v517 = vadd.f32 %v469, %v516
        %v518 = vpop.f32.mrb[0].mxu0
        %v519 = vpop.f32.mrb[0].mxu0
        %520 = vdwg.mxu0
        %v521 = vmul.f32 %v515, 0.5
        %v522 = vmul.f32 %v517, 0.5
        %v523 = vtanh.pop %v521
        %v524 = vtanh.pop %v522
        %v525 = vmul.f32 %v523, 0.5
        %v526 = vmul.f32 %v524, 0.5
        %v527 = vadd.f32 %v525, 0.5
        %v528 = vadd.f32 %v526, 0.5
        %v531 = vcombine.low %v527, %v528
        %533 = vst [vmem:[%s231] sm:$0xff] %v531
        %vm534 = vcmask 1043456
        %v535 = vsel %vm534, %v399, 0.0
        %v536 = vsel %vm534, %v400, 0.0
        %v537 = vadd.f32 %v535, %v536
        %538 = vadd.xlane.f32.xlu0 %v537
        %v539 = vpop.xlane.xlu0 %538
        %v540 = vadd.f32 %v539, 0.0
        %v541 = vld [vmem:[%s252] sm:$0xf]
        %v542 = vadd.f32 %v541, %v540
        %vm543 = vcmask 3072
        %544 = vst.msk [vmem:[%s252] sm:$0xf] %vm543, %v542
        %s545 = sand.u32 %s112, 1
        %s546 = scalar_lea.sflag [#allocation4], %s545
        %s547 = sand.u32 %s112, 1
        %s548 = smul.addr %s547, 8
        %s549 = scalar_lea.vmem [#allocation5], %s548
        %p550 = scmp.lt.s32.totalorder %s24, 1
        %s551 = scalar_select %p550, %s24, 1
        %s552 = smul.addr %s551, 4
        %s553 = scalar_lea.vmem %s4, %s552
        // Predicated region
        $region41: #{tpu_custom_call.1} parent=31 // pred_check
          %p554 = pneg %p122
        $region42: #{tpu_custom_call.1} parent=31 // pred_check_branch
          %556 = sbr.rel (%p554) target = $region44
        $region43: #{tpu_custom_call.1} parent=31 // pred_region
          %s557 = smul.u32 2, %s25
          %s559 = ssub.s32 128, 128
          %560 = vsyncadd %s546, %s559
          %s561 = smul.addr %s24, 2
          %s562 = sadd.s32 %s557, %s561
          %s563 = smul.addr %s562, 64
          %s564 = scalar_lea.hbm %s3, %s563
          %s566 = sshll.u32 %s549, 4
          %s567 = int_to_ptr.vmem [resolvable:$true] %s566
          %569 = dma.vmem_to_hbm [thread:$0]  %s567, 128, %s564, %s546
        $region44: #{tpu_custom_call.1} parent=31 // pred_fallthru
          _
        // Predicated region
        $region45: #{tpu_custom_call.1} parent=31 // pred_check
          %p570 = pneg %p148
        $region46: #{tpu_custom_call.1} parent=31 // pred_check_branch
          %572 = sbr.rel (%p570) target = $region48
        $region47: #{tpu_custom_call.1} parent=31 // pred_region
          _
        $region48: #{tpu_custom_call.1} parent=31 // pred_fallthru
          _
      $region32: #{tpu_custom_call.1} parent=5 // pred_fallthru
        _
      %p573 = scmp.le.s32.totalorder 2, %s15
      // Predicated region
      $region49: #{tpu_custom_call.1} parent=5 // pred_check
        %p574 = pneg %p573
      $region50: #{tpu_custom_call.1} parent=5 // pred_check_branch
        %576 = sbr.rel (%p574) target = $region52
      $region51: #{tpu_custom_call.1} parent=5 // pred_region
        %s577 = ssub.s32 %s15, 2
        // Predicated region
        $region53: #{tpu_custom_call.1} parent=51 // pred_check
          %p578 = pneg %p128
        $region54: #{tpu_custom_call.1} parent=51 // pred_check_branch
          %580 = sbr.rel (%p578) target = $region56
        $region55: #{tpu_custom_call.1} parent=51 // pred_region
          %s581 = sand.u32 %s113, 1
          %s582 = scalar_lea.sflag [#allocation4], %s581
          %s583 = sand.u32 %s113, 1
          %s584 = smul.addr %s583, 8
          %s585 = scalar_lea.vmem [#allocation5], %s584
          %586 = dma.done %s582, 128
        $region56: #{tpu_custom_call.1} parent=51 // pred_fallthru
          _
        // Predicated region
        $region57: #{tpu_custom_call.1} parent=51 // pred_check
          %p587 = pneg %p154
        $region58: #{tpu_custom_call.1} parent=51 // pred_check_branch
          %589 = sbr.rel (%p587) target = $region60
        $region59: #{tpu_custom_call.1} parent=51 // pred_region
          %p590 = scmp.lt.s32.totalorder %s26, 1
          %s591 = scalar_select %p590, %s26, 1
          %s592 = smul.addr %s591, 4
          %s593 = scalar_lea.vmem %s4, %s592
        $region60: #{tpu_custom_call.1} parent=51 // pred_fallthru
          _
      $region52: #{tpu_custom_call.1} parent=5 // pred_fallthru
        _
    $region6: #{tpu_custom_call.1} parent=1 // loop_footer
      %s19 = sadd.s32 1, %s15
    $region7: #{tpu_custom_call.1} parent=1 // loop_footer_branch
      %14 = sbr.rel target = $region3
    $region8: #{tpu_custom_call.1} parent=1 // loop_exit
      _
    %594 = vsyncpa [#allocation3], 1
    %s595 = scalar_lea.sflag [#allocation3], 1
    %596 = vsyncpa %s595, 1
    %597 = vsyncpa [#allocation4], 1
    %s598 = scalar_lea.sflag [#allocation4], 1
    %599 = vsyncpa %s598, 1

</llo_original>
